<compile_context>
chip_gen: v5e
topology: v5e:2x2
jax: 0.10.0
libtpu: 0.0.40
codegen_flags: <defaults>
</compile_context>

<pallas_src>
import jax
import jax.numpy as jnp
from jax.experimental import pallas as pl
from jax.experimental.pallas import tpu as pltpu

_HIDDEN = 128


def _cdiv(a, b):
    return -(-a // b)


def _round_up(a, m):
    return _cdiv(a, m) * m


def _disc_kernel(x_ref, w1_ref, b1_ref, w2_ref, b2_ref, o_ref):
    # x_ref : (TM, D)  compute dtype (bf16 by default)
    # w1_ref: (D, H)   compute dtype
    # b1_ref: (1, H)   f32
    # w2_ref: (1, H)   f32
    # b2_ref: (1, 1)   f32 scalar in SMEM
    # o_ref : (1, TM)  f32, lane-dense output row
    x = x_ref[...]

    # Layer 1 on the MXU, f32 accumulation.
    h = jnp.dot(x, w1_ref[...], preferred_element_type=jnp.float32)
    h = jnp.maximum(h + b1_ref[...], 0.0)                    # ReLU

    # Layer 2: contract the hidden axis of h against the (1, H) weight row.
    # dot_general((1,H), (TM,H), contract (1,1)) -> (1, TM): the result is
    # already lane-dense (no width-1 MXU output column, no masked stores) and
    # h is consumed as a transposed-RHS MXU operand.
    logits = jax.lax.dot_general(
        w2_ref[...], h,
        dimension_numbers=(((1,), (1,)), ((), ())),
        preferred_element_type=jnp.float32)                   # (1, TM)

    o_ref[...] = jax.nn.sigmoid(logits + b2_ref[0, 0]).astype(o_ref.dtype)


def discriminator_forward(x, w1, b1, w2, b2, *, tm=None,
                          compute_dtype=jnp.bfloat16):
    """x: [N, D] -> [N, 1] probabilities (matches the torch module output).

    Streamed operands (x, W1) are cast to `compute_dtype` (bf16 by default);
    accumulation and the output are always float32.
    """
    N, D = x.shape
    H = w1.shape[1]
    assert w1.shape == (D, H) and b1.shape == (1, H)
    assert w2.shape == (H, 1) and b2.shape == (1, 1)

    # Enforce a consistent compute dtype on the streamed operands; biases and
    # the tiny second-layer weight stay f32.
    x_c = x.astype(compute_dtype)
    w1_c = w1.astype(compute_dtype)
    b1_f = b1.astype(jnp.float32)
    w2_row = w2.reshape(1, H).astype(jnp.float32)
    b2_f = b2.astype(jnp.float32)

    x_item = jnp.dtype(compute_dtype).itemsize

    if tm is None:
        if N <= 64:
            # Tiny-batch path: single grid step, minimal sublane padding
            # (16 rows covers bf16 packing).  Padding 8 rows up to 128 would
            # waste >90% of the DMA/MXU work while fixed call overhead
            # dominates anyway.
            tm = _round_up(max(N, 1), 16)
            grid_n = 1
        else:
            # VMEM-budget-driven row tile: ~6 MiB per x input buffer (the
            # pipeline double-buffers it), rounded down to a multiple of 128
            # so the (1, tm) output row stays lane-dense / unmasked.  Big
            # tiles amortize the ~0.35 us per-grid-step overhead.
            budget = 6 * 1024 * 1024
            tm_budget = max(128, (budget // max(1, D * x_item)) // 128 * 128)
            n128 = _round_up(N, 128)
            tm = min(tm_budget, n128)
            grid_n = _cdiv(n128, tm)
            # v7x megacore: keep a >1 "parallel" grid even so both
            # TensorCores get equal work.  Harmless on single-TC v5e/v6e.
            if grid_n > 1 and grid_n % 2 == 1:
                grid_n += 1
                tm = _round_up(_cdiv(n128, grid_n), 128)
                grid_n = _cdiv(n128, tm)
                if grid_n > 1 and grid_n % 2 == 1:
                    grid_n += 1
    else:
        grid_n = _cdiv(N, tm)

    # Pad rows up to grid_n * tm (padded rows produce finite garbage that is
    # sliced off below).
    n_rows = tm * grid_n
    if n_rows != N:
        x_c = jnp.pad(x_c, ((0, n_rows - N), (0, 0)))

    # Rough per-call VMEM footprint (double-buffered inputs / output).  Raise
    # the scoped limit when needed while staying well under v7x's 64 MiB
    # physical VMEM.
    # TODO(synk): for very large input_dim, add a D-reduction grid axis with
    # an f32 acc scratch instead of keeping W1 fully resident.
    vmem_need = (2 * tm * D * x_item          # x tiles
                 + 2 * D * H * x_item         # W1 (conservatively x2)
                 + 4 * H * 4                  # b1, w2 rows
                 + 2 * tm * 4)                # output row
    vmem_limit = int(min(48 * 1024 * 1024,
                         max(16 * 1024 * 1024, 2 * vmem_need)))

    cost = pl.CostEstimate(
        flops=2 * n_rows * D * H + 2 * n_rows * H,
        transcendentals=2 * n_rows,            # sigmoid ~ exp + reciprocal
        bytes_accessed=(n_rows * D * x_item    # x (compute dtype)
                        + D * H * x_item       # W1 (compute dtype)
                        + 2 * H * 4 + 4        # b1, w2, b2
                        + n_rows * 4),         # f32 output row
    )

    out_row = pl.pallas_call(
        _disc_kernel,
        out_shape=jax.ShapeDtypeStruct((1, n_rows), jnp.float32),
        grid_spec=pltpu.PrefetchScalarGridSpec(
            num_scalar_prefetch=0,
            grid=(grid_n,),
            in_specs=[
                pl.BlockSpec((tm, D), lambda i: (i, 0)),   # x row tile
                pl.BlockSpec((D, H), lambda i: (0, 0)),    # W1 (resident)
                pl.BlockSpec((1, H), lambda i: (0, 0)),    # b1
                pl.BlockSpec((1, H), lambda i: (0, 0)),    # W2 as a row
                pl.BlockSpec(memory_space=pltpu.MemorySpace.SMEM),  # b2 scalar
            ],
            out_specs=pl.BlockSpec((1, tm), lambda i: (0, i)),      # lane-dense
        ),
        compiler_params=pltpu.CompilerParams(
            dimension_semantics=("parallel",),
            vmem_limit_bytes=vmem_limit,
        ),
        cost_estimate=cost,
    )(x_c, w1_c, b1_f, w2_row, b2_f)

    # (1, n_rows) row-major -> (n_rows, 1), drop row padding.
    return out_row.reshape(n_rows, 1)[:N]


def init_params(key, input_dim, hidden=_HIDDEN):
    """Deterministic init mimicking nn.Linear's default U(-1/sqrt(fan_in), +)."""
    k1, k2, k3, k4 = jax.random.split(key, 4)
    bound1 = 1.0 / jnp.sqrt(input_dim)
    bound2 = 1.0 / jnp.sqrt(hidden)
    w1 = jax.random.uniform(k1, (input_dim, hidden), jnp.float32, -bound1, bound1)
    b1 = jax.random.uniform(k2, (1, hidden), jnp.float32, -bound1, bound1)
    w2 = jax.random.uniform(k3, (hidden, 1), jnp.float32, -bound2, bound2)
    b2 = jax.random.uniform(k4, (1, 1), jnp.float32, -bound2, bound2)
    return w1, b1, w2, b2


def _reference(x, w1, b1, w2, b2, compute_dtype=jnp.bfloat16):
    # Apply the same streamed-operand cast as the kernel (bf16 inputs,
    # f32 accumulation) so the comparison is apples-to-apples.
    xc = x.astype(compute_dtype).astype(jnp.float32)
    w1c = w1.astype(compute_dtype).astype(jnp.float32)
    h = jnp.maximum(
        jnp.dot(xc, w1c, precision=jax.lax.Precision.HIGHEST) + b1, 0.0)
    z = jnp.dot(h, w2, precision=jax.lax.Precision.HIGHEST) + b2
    return jax.nn.sigmoid(z)


if __name__ == "__main__":
    key = jax.random.PRNGKey(0)
    k_x1, k_x2, k_p = jax.random.split(key, 3)

    D = 32
    w1, b1, w2, b2 = init_params(k_p, D)

    # Case 1: tiny batch (single-step, minimal-padding fast path).
    N1 = 8
    x1 = jax.random.normal(k_x1, (N1, D), dtype=jnp.float32)
    out1 = jax.block_until_ready(discriminator_forward(x1, w1, b1, w2, b2))
    ref1 = _reference(x1, w1, b1, w2, b2)
    assert out1.shape == (N1, 1)
    assert jnp.allclose(out1, ref1, atol=1e-4, rtol=1e-4), \
        float(jnp.max(jnp.abs(out1 - ref1)))

    # Case 2: N not a multiple of the tile (auto tile -> one big padded step).
    N2 = 300
    x2 = jax.random.normal(k_x2, (N2, D), dtype=jnp.float32)
    out2 = jax.block_until_ready(discriminator_forward(x2, w1, b1, w2, b2))
    ref2 = _reference(x2, w1, b1, w2, b2)
    assert out2.shape == (N2, 1)
    assert jnp.allclose(out2, ref2, atol=1e-4, rtol=1e-4), \
        float(jnp.max(jnp.abs(out2 - ref2)))

    # Case 3: force a multi-step grid (tm=128 -> 3 steps, padded) to exercise
    # the streamed/pipelined path.
    out3 = jax.block_until_ready(
        discriminator_forward(x2, w1, b1, w2, b2, tm=128))
    assert out3.shape == (N2, 1)
    assert jnp.allclose(out3, ref2, atol=1e-4, rtol=1e-4), \
        float(jnp.max(jnp.abs(out3 - ref2)))

    print("KERNEL_OK")
</pallas_src>

<mosaic_0001>
module attributes {stable_mosaic.version = 11 : i64} {
  func.func @_disc_kernel(%arg0: i32, %arg1: memref<16x32xbf16, #tpu.memory_space<vmem>>, %arg2: memref<32x128xbf16, #tpu.memory_space<vmem>>, %arg3: memref<1x128xf32, #tpu.memory_space<vmem>>, %arg4: memref<1x128xf32, #tpu.memory_space<vmem>>, %arg5: memref<1x1xf32, #tpu.memory_space<smem>>, %arg6: memref<1x16xf32, #tpu.memory_space<vmem>>) attributes {dimension_semantics = [#tpu.dimension_semantics<parallel>], iteration_bounds = array<i64: 1>, scalar_prefetch = 0 : i64, scratch_operands = 0 : i64, tpu.core_type = #tpu.core_type<tc>, window_params = [{transform_indices = @transform_0, window_bounds = array<i64: 16, 32>}, {pipeline_mode = #tpu.pipeline_mode<synchronous>, transform_indices = @transform_1, window_bounds = array<i64: 32, 128>}, {pipeline_mode = #tpu.pipeline_mode<synchronous>, transform_indices = @transform_2, window_bounds = array<i64: 1, 128>}, {pipeline_mode = #tpu.pipeline_mode<synchronous>, transform_indices = @transform_3, window_bounds = array<i64: 1, 128>}, {transform_indices = @transform_4, window_bounds = array<i64: 1, 1>}, {transform_indices = @transform_5, window_bounds = array<i64: 1, 16>}]} {
    %c0 = arith.constant 0 : index
    %c0_0 = arith.constant 0 : index
    %0 = vector.load %arg1[%c0, %c0_0] : memref<16x32xbf16, #tpu.memory_space<vmem>>, vector<16x32xbf16>
    %c0_1 = arith.constant 0 : index
    %c0_2 = arith.constant 0 : index
    %1 = vector.load %arg2[%c0_1, %c0_2] : memref<32x128xbf16, #tpu.memory_space<vmem>>, vector<32x128xbf16>
    %cst = arith.constant dense<0.000000e+00> : vector<16x128xf32>
    %2 = tpu.matmul %0, %1, %cst {dimension_numbers = #tpu.dot_dimension_numbers<[1], [0], [0], [1], [0, 0, 1, 1], [], []>} : vector<16x32xbf16>, vector<32x128xbf16>, vector<16x128xf32> -> vector<16x128xf32>
    %c0_3 = arith.constant 0 : index
    %c0_4 = arith.constant 0 : index
    %3 = vector.load %arg3[%c0_3, %c0_4] : memref<1x128xf32, #tpu.memory_space<vmem>>, vector<1x128xf32>
    %4 = vector.broadcast %3 : vector<1x128xf32> to vector<16x128xf32>
    %5 = arith.addf %2, %4 : vector<16x128xf32>
    %cst_5 = arith.constant 0.000000e+00 : f32
    %6 = vector.broadcast %cst_5 : f32 to vector<16x128xf32>
    %7 = arith.maximumf %5, %6 : vector<16x128xf32>
    %c0_6 = arith.constant 0 : index
    %c0_7 = arith.constant 0 : index
    %8 = vector.load %arg4[%c0_6, %c0_7] : memref<1x128xf32, #tpu.memory_space<vmem>>, vector<1x128xf32>
    %cst_8 = arith.constant dense<0.000000e+00> : vector<1x16xf32>
    %9 = tpu.matmul %8, %7, %cst_8 {dimension_numbers = #tpu.dot_dimension_numbers<[1], [1], [0], [0], [0, 0, 1, 0], [], []>} : vector<1x128xf32>, vector<16x128xf32>, vector<1x16xf32> -> vector<1x16xf32>
    %c0_9 = arith.constant 0 : index
    %c0_10 = arith.constant 0 : index
    %10 = memref.load %arg5[%c0_9, %c0_10] : memref<1x1xf32, #tpu.memory_space<smem>>
    %11 = vector.broadcast %10 : f32 to vector<1x16xf32>
    %12 = arith.addf %9, %11 : vector<1x16xf32>
    %13 = arith.negf %12 : vector<1x16xf32>
    %14 = math.exp %13 : vector<1x16xf32>
    %cst_11 = arith.constant 1.000000e+00 : f32
    %15 = vector.broadcast %cst_11 : f32 to vector<1x16xf32>
    %16 = arith.addf %15, %14 : vector<1x16xf32>
    %17 = arith.divf %15, %16 : vector<1x16xf32>
    %c0_12 = arith.constant 0 : index
    %c0_13 = arith.constant 0 : index
    %18 = vector.load %arg6[%c0_12, %c0_13] : memref<1x16xf32, #tpu.memory_space<vmem>>, vector<1x16xf32>
    tpu.vector_store %arg6[%c0_12, %c0_13], %17 {strides = array<i32>} : memref<1x16xf32, #tpu.memory_space<vmem>>, vector<1x16xf32>,
    return
  }
  func.func @transform_0(%arg0: i32) -> (i32, i32) {
    %c0_i32 = arith.constant 0 : i32
    %c0_i32_0 = arith.constant 0 : i32
    return %arg0, %c0_i32 : i32, i32
  }
  func.func @transform_1(%arg0: i32) -> (i32, i32) {
    %c0_i32 = arith.constant 0 : i32
    %c0_i32_0 = arith.constant 0 : i32
    %c0_i32_1 = arith.constant 0 : i32
    return %c0_i32, %c0_i32_0 : i32, i32
  }
  func.func @transform_2(%arg0: i32) -> (i32, i32) {
    %c0_i32 = arith.constant 0 : i32
    %c0_i32_0 = arith.constant 0 : i32
    %c0_i32_1 = arith.constant 0 : i32
    return %c0_i32, %c0_i32_0 : i32, i32
  }
  func.func @transform_3(%arg0: i32) -> (i32, i32) {
    %c0_i32 = arith.constant 0 : i32
    %c0_i32_0 = arith.constant 0 : i32
    %c0_i32_1 = arith.constant 0 : i32
    return %c0_i32, %c0_i32_0 : i32, i32
  }
  func.func @transform_4(%arg0: i32) -> (i32, i32) {
    %c0_i32 = arith.constant 0 : i32
    %c0_i32_0 = arith.constant 0 : i32
    %c0_i32_1 = arith.constant 0 : i32
    return %c0_i32, %c0_i32_0 : i32, i32
  }
  func.func @transform_5(%arg0: i32) -> (i32, i32) {
    %c0_i32 = arith.constant 0 : i32
    %c0_i32_0 = arith.constant 0 : i32
    return %c0_i32, %arg0 : i32, i32
  }
}

</mosaic_0001>

<llo_original>
// kernel: tpu_custom_call.1
$region0: #{tpu_custom_call.1}
  #allocation0 [shape = 'u32[]', space=smem, size = 0x4, offset = 0x4, fixed_abs, tag = 'smem constant byte address 0x4 - core index']
  #allocation1 [shape = 'u32[72,128]{1,0:T(1,128)}', space=vmem, size = 0x9000, scoped, tag = 'internal scratch']
  #allocation2 [shape = 'f32[1,1]{1,0:T(1,128)S(6)}', space=smem, size = 0x200, scoped, tag = 'scoped memory for tpu_custom_call.1']
  %s0 = inlined_call_operand.hbm [shape: bf16[16,32], index: 0, kind: input, shape index: {}]
  %s1 = inlined_call_operand.hbm [shape: bf16[32,128], index: 1, kind: input, shape index: {}]
  %s2 = inlined_call_operand.vmem [shape: f32[1,128], index: 2, kind: input, shape index: {}]
  %s3 = inlined_call_operand.vmem [shape: f32[1,128], index: 3, kind: input, shape index: {}]
  %s4 = inlined_call_operand.<no memory space> [shape: f32[1,1], index: 4, kind: input, shape index: {}]
  %s5 = inlined_call_operand.hbm [shape: f32[1,16], index: 5, kind: output, shape index: {}]
  %s6 = sld [smem:[#allocation0]]
  $region38: #{tpu_custom_call.1} parent=0
    _
  %s8 = ssub.s32 1, %s6
  %s9 = scalar_select 0, %s8, %s6
  %10 = sst [smem:[#allocation2]] %s4
  $region1: #{tpu_custom_call.1} parent=0
    #allocation3 [shape = 'u8[4096]{0}', space=vmem, size = 0x1000, scoped, tag = 'input window, operand 0, single buffered']
    #allocation4 [shape = 's32[1]{0}', space=sflag, size = 0x4, scoped, tag = 'scoped memory for tpu_custom_call.1']
    #allocation5 [shape = 's32[1]{0}', space=sflag, size = 0x4, scoped, tag = 'scoped memory for tpu_custom_call.1']
    #allocation6 [shape = 'u8[8192]{0}', space=vmem, size = 0x2000, scoped, tag = 'input window, operand 1, single buffered']
    #allocation7 [shape = 's32[1]{0}', space=sflag, size = 0x4, scoped, tag = 'scoped memory for tpu_custom_call.1']
    #allocation8 [shape = 'u8[512]{0}', space=vmem, size = 0x400, scoped, tag = 'output window, operand 0, single buffered']
    %11 = vsyncpa [#allocation4], 0
    %12 = vsyncpa [#allocation7], 0
    %13 = vsyncpa [#allocation5], 0
    // Predicated region
    $region2: #{tpu_custom_call.1} parent=1 // pred_check
      _
    $region3: #{tpu_custom_call.1} parent=1 // pred_check_branch
      %15 = sbr.rel (0) target = $region5
    $region4: #{tpu_custom_call.1} parent=1 // pred_region
      %17 = vsyncadd [#allocation4], 0
      %s18 = sshll.u32 %s0, 4
      %s19 = int_to_ptr.hbm [resolvable:$true] %s18
      %s20 = sshll.u32 [#allocation3], 4
      %s21 = int_to_ptr.vmem [resolvable:$true] %s20
      %26 = dma.hbm_to_vmem [thread:$0]  %s19, 128, %s21, [#allocation4], 64, 64, 4
    $region5: #{tpu_custom_call.1} parent=1 // pred_fallthru
      _
    // Predicated region
    $region6: #{tpu_custom_call.1} parent=1 // pred_check
      _
    $region7: #{tpu_custom_call.1} parent=1 // pred_check_branch
      %28 = sbr.rel (0) target = $region9
    $region8: #{tpu_custom_call.1} parent=1 // pred_region
      %30 = vsyncadd [#allocation7], 0
      %s31 = sshll.u32 %s1, 4
      %s32 = int_to_ptr.hbm [resolvable:$true] %s31
      %s33 = sshll.u32 [#allocation6], 4
      %s34 = int_to_ptr.vmem [resolvable:$true] %s33
      %39 = dma.hbm_to_vmem [thread:$0]  %s32, 256, %s34, [#allocation7], 64, 64, 4
    $region9: #{tpu_custom_call.1} parent=1 // pred_fallthru
      _
    // Predicated region
    $region10: #{tpu_custom_call.1} parent=1 // pred_check
      _
    $region11: #{tpu_custom_call.1} parent=1 // pred_check_branch
      %41 = sbr.rel (0) target = $region13
    $region12: #{tpu_custom_call.1} parent=1 // pred_region
      _
    $region13: #{tpu_custom_call.1} parent=1 // pred_fallthru
      _
    // Predicated region
    $region14: #{tpu_custom_call.1} parent=1 // pred_check
      _
    $region15: #{tpu_custom_call.1} parent=1 // pred_check_branch
      %43 = sbr.rel (0) target = $region17
    $region16: #{tpu_custom_call.1} parent=1 // pred_region
      _
    $region17: #{tpu_custom_call.1} parent=1 // pred_fallthru
      _
    // Predicated region
    $region18: #{tpu_custom_call.1} parent=1 // pred_check
      _
    $region19: #{tpu_custom_call.1} parent=1 // pred_check_branch
      %45 = sbr.rel (0) target = $region21
    $region20: #{tpu_custom_call.1} parent=1 // pred_region
      _
    $region21: #{tpu_custom_call.1} parent=1 // pred_fallthru
      _
    // Predicated region
    $region22: #{tpu_custom_call.1} parent=1 // pred_check
      _
    $region23: #{tpu_custom_call.1} parent=1 // pred_check_branch
      %47 = sbr.rel (0) target = $region25
    $region24: #{tpu_custom_call.1} parent=1 // pred_region
      %49 = dma.done [#allocation4], 128
    $region25: #{tpu_custom_call.1} parent=1 // pred_fallthru
      _
    // Predicated region
    $region26: #{tpu_custom_call.1} parent=1 // pred_check
      _
    $region27: #{tpu_custom_call.1} parent=1 // pred_check_branch
      %51 = sbr.rel (0) target = $region29
    $region28: #{tpu_custom_call.1} parent=1 // pred_region
      %53 = dma.done [#allocation7], 256
    $region29: #{tpu_custom_call.1} parent=1 // pred_fallthru
      _
    %v55 = vld [vmem:[#allocation3] sm:$0xf]
    %v56 = vld [vmem:[#allocation3 + $0x4] sm:$0xf]
    %v57 = vld [vmem:[#allocation6] sm:$0xf]
    %v58 = vld [vmem:[#allocation6 + $0x4] sm:$0xf]
    %v59 = vld [vmem:[#allocation6 + $0x8] sm:$0xf]
    %v60 = vld [vmem:[#allocation6 + $0xc] sm:$0xf]
    %v61 = vld [vmem:[%s2] sm:$0x1]
    %v63 = vperm.slane %v61, 0
    %v67 = vunpack.c.l.b16 %v55
    %v68 = vunpack.c.l.b16 %v56
    %v69 = vpack.c.b16 %v68, %v67
    %v74 = vunpack.c.l.b16 %v57
    %v75 = vunpack.c.l.b16 %v58
    %v76 = vunpack.c.l.b16 %v59
    %v77 = vunpack.c.l.b16 %v60
    %v78 = vpack.c.b16 %v75, %v74
    %v79 = vpack.c.b16 %v77, %v76
    %vm82 = vcmask 261120
    %v84 = vsel %vm82, %v69, 0
    %86 = vmatpush.bf16.msra.mxu0 0
    %87 = vmatpush.bf16.msra.mxu0 0
    %88 = vmatpush.bf16.msra.mxu0 0
    %89 = vmatpush.bf16.msra.mxu0 0
    %90 = vmatpush.bf16.msra.mxu0 0
    %91 = vmatpush.bf16.msra.mxu0 0
    %92 = vmatpush.bf16.msra.mxu0 %v79
    %93 = vmatpush.bf16.msra.mxu0 %v78
    %94 = vmatmul.bf16.gmra.mxu0 %v84
    %v95 = vpop.f32.mrf.mxu0
    %v96 = vadd.f32 %v63, %v95
    %v97 = vpop.f32.mrf.mxu0
    %v98 = vadd.f32 %v63, %v97
    %99 = vdwg.mxu0
    %v100 = vmax.f32 %v96, 0.0
    %v101 = vmax.f32 %v98, 0.0
    %v102 = vld [vmem:[%s3] sm:$0x1]
    %s103 = sld [smem:[#allocation2]]
    %v104 = vstv %s103
    %105 = vmatpush.xpose.msra.mxu0 0.0
    %106 = vmatpush.xpose.msra.mxu0 0.0
    %107 = vmatpush.xpose.msra.mxu0 0.0
    %108 = vmatpush.xpose.msra.mxu0 0.0
    %109 = vmatpush.xpose.msra.mxu0 0.0
    %110 = vmatpush.xpose.msra.mxu0 0.0
    %111 = vmatpush.xpose.msra.mxu0 0.0
    %112 = vmatpush.xpose.msra.mxu0 0.0
    %113 = vmatpush.xpose.msra.mxu0 0.0
    %114 = vmatpush.xpose.msra.mxu0 0.0
    %115 = vmatpush.xpose.msra.mxu0 0.0
    %116 = vmatpush.xpose.msra.mxu0 0.0
    %117 = vmatpush.xpose.msra.mxu0 0.0
    %118 = vmatpush.xpose.msra.mxu0 0.0
    %119 = vmatpush.xpose.msra.mxu0 %v101
    %120 = vmatpush.xpose.msra.mxu0 %v100
    %121 = vmatmul.f32.gmra.mxu0 %v102
    %v122 = vpop.f32.mrf.mxu0
    %v123 = vadd.f32 %v104, %v122
    %124 = vdwg.mxu0
    %v125 = vxor.u32 %v123, 2147483648
    %v126 = vmul.f32 %v125, 1.442695
    %v127 = vpow.pop %v126
    %v128 = vadd.f32 %v127, 1.0
    %v129 = vrcp.pop %v128
    %v130 = vmul.f32 %v128, %v129
    %v131 = vsub.f32 1.0, %v130
    %v132 = vmul.f32 %v129, %v131
    %v133 = vadd.f32 %v129, %v132
    %vm134 = vweird.f32 %v128
    %vm135 = vweird.f32 %v129
    %vm136 = vmor %vm134, %vm135
    %v137 = vsel %vm136, %v129, %v133
    %v138 = vand.u32 2147483647, %v128
    %vm139 = vcmp.eq.f32.partialorder %v138, 8.507059e+37
    %v140 = vand.u32 %v128, 2147483648
    %v141 = vor.u32 1.1754944e-38, %v140
    %v142 = vsel %vm139, %v141, %v137
    %v143 = vmul.f32 1.0, %v142
    %vm144 = vcmask 122880
    %145 = vst.msk [vmem:[#allocation8] sm:$0x1] %vm144, %v143
    // Predicated region
    $region30: #{tpu_custom_call.1} parent=1 // pred_check
      _
    $region31: #{tpu_custom_call.1} parent=1 // pred_check_branch
      %147 = sbr.rel (0) target = $region33
    $region32: #{tpu_custom_call.1} parent=1 // pred_region
      %149 = vsyncadd [#allocation5], 0
      %s151 = sshll.u32 [#allocation8], 4
      %s152 = int_to_ptr.vmem [resolvable:$true] %s151
      %s153 = sshll.u32 %s5, 4
      %s154 = int_to_ptr.hbm [resolvable:$true] %s153
      %156 = dma.vmem_to_hbm [thread:$0]  %s152, 16, %s154, [#allocation5]
    $region33: #{tpu_custom_call.1} parent=1 // pred_fallthru
      _
    // Predicated region
    $region34: #{tpu_custom_call.1} parent=1 // pred_check
      _
    $region35: #{tpu_custom_call.1} parent=1 // pred_check_branch
      %158 = sbr.rel (0) target = $region37
    $region36: #{tpu_custom_call.1} parent=1 // pred_region
      %160 = dma.done [#allocation5], 16
    $region37: #{tpu_custom_call.1} parent=1 // pred_fallthru
      _
    %161 = vsyncpa [#allocation4], 1
    %162 = vsyncpa [#allocation7], 1
    %163 = vsyncpa [#allocation5], 1

</llo_original>
